<compile_context>
chip_gen: v7x
topology: tpu7x:2x2x1
jax: 0.10.0
libtpu: 0.0.40
codegen_flags: <defaults>
</compile_context>

<pallas_src>
import functools

import jax
import jax.numpy as jnp
from jax.experimental import pallas as pl
from jax.experimental.pallas import tpu as pltpu


def _round_up(n, m):
    return ((n + m - 1) // m) * m


# ----------------------------- Pallas kernel --------------------------------
def _qkan_kernel(x_ref, wn_ref, wf_ref, out_ref, *, degree, grid_size):
    # x_ref : (Fp, TB)  features on sublanes (padded to 8), batch on lanes
    # wn_ref: (Fp, D)   pre-normalized LCU weights (normalization hoisted)
    # wf_ref: (C, Fp*(G+1)) fused [base | spline_0 .. spline_{G-1}] weights
    # out   : (C, TB)   lane-dense logits (batch on lanes)
    x = x_ref[...]
    wn = wn_ref[...]
    wf = wf_ref[...]

    # ---- QSVT proxy + LCU + QuantumSumBlock: running Chebyshev accumulation
    # feat = sum_k wn[:, k] * T_{k+1}(tanh(x)); everything stays (Fp, TB),
    # no stack, no cross-lane reduce.
    t = jnp.tanh(x)
    t_prev = jnp.ones_like(t)          # T_0
    t_cur = t                          # T_1
    feat = wn[:, 0:1] * t_cur
    for k in range(1, degree):
        t_next = 2.0 * t * t_cur - t_prev
        feat = feat + wn[:, k:k + 1] * t_next
        t_prev, t_cur = t_cur, t_next

    # ---- KAN layer: SiLU base branch + Chebyshev spline branch -------------
    base = feat * jax.nn.sigmoid(feat)          # SiLU (EUP logistic), (Fp, TB)

    ft = jnp.tanh(feat)
    s_prev = jnp.ones_like(ft)                  # T_0
    s_cur = ft                                  # T_1
    rows = [base, s_prev, s_cur]
    for _ in range(grid_size - 2):
        s_next = 2.0 * ft * s_cur - s_prev
        rows.append(s_next)
        s_prev, s_cur = s_cur, s_next

    # Fused contraction: one matmul over K = Fp*(G+1) instead of two tiny ones.
    # Every row block is an (8, TB) tile, so the concat is sublane-aligned.
    m = jnp.concatenate(rows, axis=0)           # (Fp*(G+1), TB)
    out_ref[...] = jnp.dot(wf, m,
                           preferred_element_type=jnp.float32
                           ).astype(out_ref.dtype)


# ------------------------------ wrapper --------------------------------------
def quantum_kan_forward(x, lcu_w, base_w, spline_w, *, tile_b=None):
    B, F = x.shape
    C, _, G = spline_w.shape
    D = lcu_w.shape[1]
    assert D >= 1 and G >= 2, "degree >= 1 and grid_size >= 2 required"

    # ---- trace-time prep (all constant work hoisted out of the kernel) -----
    # 1. LCU weight normalization (constant across the whole grid).
    wn = lcu_w / (jnp.sum(jnp.abs(lcu_w), axis=-1, keepdims=True) + 1e-8)
    # 2. Pad features to a multiple of 8 sublanes (padded rows are inert:
    #    zero inputs times zero weights).
    Fp = _round_up(F, 8)
    wn_p = jnp.zeros((Fp, D), jnp.float32).at[:F].set(wn)
    # 3. Fused weight [base | spline_g=0 .. G-1], each block (C, Fp).
    blocks = [jnp.zeros((C, Fp), jnp.float32).at[:, :F].set(base_w)]
    for g in range(G):
        blocks.append(
            jnp.zeros((C, Fp), jnp.float32).at[:, :F].set(spline_w[:, :, g]))
    w_fused = jnp.concatenate(blocks, axis=1)        # (C, Fp*(G+1))
    # 4. Batch on the lane axis: transpose and pad batch up to the tile size.
    if tile_b is None:
        tile_b = min(_round_up(B, 128), 1024)        # biggest sensible tile
    tile_b = _round_up(tile_b, 128)
    Bp = _round_up(B, tile_b)
    x_t = jnp.zeros((Fp, Bp), jnp.float32).at[:F, :B].set(x.T)

    kernel = functools.partial(_qkan_kernel, degree=D, grid_size=G)
    K = Fp * (G + 1)

    out = pl.pallas_call(
        kernel,
        out_shape=jax.ShapeDtypeStruct((C, Bp), jnp.float32),
        grid_spec=pltpu.PrefetchScalarGridSpec(
            num_scalar_prefetch=0,
            grid=(Bp // tile_b,),
            in_specs=[
                pl.BlockSpec((Fp, tile_b), lambda i: (0, i)),   # x tile
                pl.BlockSpec((Fp, D), lambda i: (0, 0)),        # normed LCU w
                pl.BlockSpec((C, K), lambda i: (0, 0)),         # fused KAN w
            ],
            out_specs=pl.BlockSpec((C, tile_b), lambda i: (0, i)),
        ),
        compiler_params=pltpu.CompilerParams(
            dimension_semantics=("parallel",)),
    )(x_t, wn_p, w_fused)

    # (C, Bp) lane-dense kernel output -> (B, C) logits.
    return out.T[:B]


# --------------------------- pure-JAX reference -------------------------------
def _reference(x, lcu_w, base_w, spline_w):
    D = lcu_w.shape[1]
    G = spline_w.shape[2]

    def cheb(t, n_terms, include_t0):
        ts = [jnp.ones_like(t), t]
        for _ in range(max(0, n_terms)):
            ts.append(2.0 * t * ts[-1] - ts[-2])
        start = 0 if include_t0 else 1
        return jnp.stack(ts[start:start + n_terms], axis=-1)

    qsvt = cheb(jnp.tanh(x), D, include_t0=False)               # (B, F, D)
    wn = lcu_w / (jnp.sum(jnp.abs(lcu_w), axis=-1, keepdims=True) + 1e-8)
    feat = jnp.sum(qsvt * wn[None], axis=-1)                    # (B, F)
    base = feat * jax.nn.sigmoid(feat)
    out = jnp.einsum("bf,cf->bc", base, base_w)
    spl = cheb(jnp.tanh(feat), G, include_t0=True)              # (B, F, G)
    out += jnp.einsum("bfg,cfg->bc", spl, spline_w)
    return out


# ------------------------------ main ------------------------------------------
if __name__ == "__main__":
    B, F = 16, 4          # iris: 4 features
    DEGREE = 5            # module default
    NUM_CLASSES = 2       # module default
    GRID = 5              # KAN spline basis size

    key = jax.random.PRNGKey(0)
    kx, kw, kb, ks = jax.random.split(key, 4)

    x = jax.random.normal(kx, (B, F), dtype=jnp.float32)
    # torch.rand(num_features, degree) ~ U[0, 1)
    lcu_w = jax.random.uniform(kw, (F, DEGREE), dtype=jnp.float32)
    base_w = 0.1 * jax.random.normal(kb, (NUM_CLASSES, F), dtype=jnp.float32)
    spline_w = 0.1 * jax.random.normal(ks, (NUM_CLASSES, F, GRID),
                                       dtype=jnp.float32)

    logits = quantum_kan_forward(x, lcu_w, base_w, spline_w)
    logits = jax.block_until_ready(logits)

    ref = _reference(x, lcu_w, base_w, spline_w)
    assert logits.shape == (B, NUM_CLASSES)
    assert jnp.allclose(logits, ref, atol=1e-4, rtol=1e-4), "mismatch vs reference"

    print("KERNEL_OK")
</pallas_src>

<mosaic_0001>
module attributes {stable_mosaic.version = 11 : i64} {
  func.func @_qkan_kernel(%arg0: i32, %arg1: memref<8x128xf32, #tpu.memory_space<vmem>>, %arg2: memref<8x5xf32, #tpu.memory_space<vmem>>, %arg3: memref<2x48xf32, #tpu.memory_space<vmem>>, %arg4: memref<2x128xf32, #tpu.memory_space<vmem>>) attributes {dimension_semantics = [#tpu.dimension_semantics<parallel>], iteration_bounds = array<i64: 1>, scalar_prefetch = 0 : i64, scratch_operands = 0 : i64, tpu.core_type = #tpu.core_type<tc>, window_params = [{transform_indices = @transform_0, window_bounds = array<i64: 8, 128>}, {pipeline_mode = #tpu.pipeline_mode<synchronous>, transform_indices = @transform_1, window_bounds = array<i64: 8, 5>}, {pipeline_mode = #tpu.pipeline_mode<synchronous>, transform_indices = @transform_2, window_bounds = array<i64: 2, 48>}, {transform_indices = @transform_3, window_bounds = array<i64: 2, 128>}]} {
    %c0 = arith.constant 0 : index
    %c0_0 = arith.constant 0 : index
    %0 = vector.load %arg1[%c0, %c0_0] : memref<8x128xf32, #tpu.memory_space<vmem>>, vector<8x128xf32>
    %c0_1 = arith.constant 0 : index
    %c0_2 = arith.constant 0 : index
    %1 = vector.load %arg2[%c0_1, %c0_2] : memref<8x5xf32, #tpu.memory_space<vmem>>, vector<8x5xf32>
    %c0_3 = arith.constant 0 : index
    %c0_4 = arith.constant 0 : index
    %2 = vector.load %arg3[%c0_3, %c0_4] : memref<2x48xf32, #tpu.memory_space<vmem>>, vector<2x48xf32>
    %3 = math.tanh %0 : vector<8x128xf32>
    %cst = arith.constant 1.000000e+00 : f32
    %4 = vector.broadcast %cst : f32 to vector<8x128xf32>
    %5 = vector.extract_strided_slice %1 {offsets = [0, 0], sizes = [8, 1], strides = [1, 1]} : vector<8x5xf32> to vector<8x1xf32>
    %6 = vector.broadcast %5 : vector<8x1xf32> to vector<8x128xf32>
    %7 = arith.mulf %6, %3 : vector<8x128xf32>
    %cst_5 = arith.constant 2.000000e+00 : f32
    %8 = vector.broadcast %cst_5 : f32 to vector<8x128xf32>
    %9 = arith.mulf %8, %3 : vector<8x128xf32>
    %10 = arith.mulf %9, %3 : vector<8x128xf32>
    %11 = arith.subf %10, %4 : vector<8x128xf32>
    %12 = vector.extract_strided_slice %1 {offsets = [0, 1], sizes = [8, 1], strides = [1, 1]} : vector<8x5xf32> to vector<8x1xf32>
    %13 = vector.broadcast %12 : vector<8x1xf32> to vector<8x128xf32>
    %14 = arith.mulf %13, %11 : vector<8x128xf32>
    %15 = arith.addf %7, %14 : vector<8x128xf32>
    %cst_6 = arith.constant 2.000000e+00 : f32
    %16 = vector.broadcast %cst_6 : f32 to vector<8x128xf32>
    %17 = arith.mulf %16, %3 : vector<8x128xf32>
    %18 = arith.mulf %17, %11 : vector<8x128xf32>
    %19 = arith.subf %18, %3 : vector<8x128xf32>
    %20 = vector.extract_strided_slice %1 {offsets = [0, 2], sizes = [8, 1], strides = [1, 1]} : vector<8x5xf32> to vector<8x1xf32>
    %21 = vector.broadcast %20 : vector<8x1xf32> to vector<8x128xf32>
    %22 = arith.mulf %21, %19 : vector<8x128xf32>
    %23 = arith.addf %15, %22 : vector<8x128xf32>
    %cst_7 = arith.constant 2.000000e+00 : f32
    %24 = vector.broadcast %cst_7 : f32 to vector<8x128xf32>
    %25 = arith.mulf %24, %3 : vector<8x128xf32>
    %26 = arith.mulf %25, %19 : vector<8x128xf32>
    %27 = arith.subf %26, %11 : vector<8x128xf32>
    %28 = vector.extract_strided_slice %1 {offsets = [0, 3], sizes = [8, 1], strides = [1, 1]} : vector<8x5xf32> to vector<8x1xf32>
    %29 = vector.broadcast %28 : vector<8x1xf32> to vector<8x128xf32>
    %30 = arith.mulf %29, %27 : vector<8x128xf32>
    %31 = arith.addf %23, %30 : vector<8x128xf32>
    %cst_8 = arith.constant 2.000000e+00 : f32
    %32 = vector.broadcast %cst_8 : f32 to vector<8x128xf32>
    %33 = arith.mulf %32, %3 : vector<8x128xf32>
    %34 = arith.mulf %33, %27 : vector<8x128xf32>
    %35 = arith.subf %34, %19 : vector<8x128xf32>
    %36 = vector.extract_strided_slice %1 {offsets = [0, 4], sizes = [8, 1], strides = [1, 1]} : vector<8x5xf32> to vector<8x1xf32>
    %37 = vector.broadcast %36 : vector<8x1xf32> to vector<8x128xf32>
    %38 = arith.mulf %37, %35 : vector<8x128xf32>
    %39 = arith.addf %31, %38 : vector<8x128xf32>
    %40 = arith.negf %39 : vector<8x128xf32>
    %41 = math.exp %40 : vector<8x128xf32>
    %cst_9 = arith.constant 1.000000e+00 : f32
    %42 = vector.broadcast %cst_9 : f32 to vector<8x128xf32>
    %43 = arith.addf %42, %41 : vector<8x128xf32>
    %44 = arith.divf %42, %43 : vector<8x128xf32>
    %45 = arith.mulf %39, %44 : vector<8x128xf32>
    %46 = math.tanh %39 : vector<8x128xf32>
    %cst_10 = arith.constant 1.000000e+00 : f32
    %47 = vector.broadcast %cst_10 : f32 to vector<8x128xf32>
    %cst_11 = arith.constant 2.000000e+00 : f32
    %48 = vector.broadcast %cst_11 : f32 to vector<8x128xf32>
    %49 = arith.mulf %48, %46 : vector<8x128xf32>
    %50 = arith.mulf %49, %46 : vector<8x128xf32>
    %51 = arith.subf %50, %47 : vector<8x128xf32>
    %cst_12 = arith.constant 2.000000e+00 : f32
    %52 = vector.broadcast %cst_12 : f32 to vector<8x128xf32>
    %53 = arith.mulf %52, %46 : vector<8x128xf32>
    %54 = arith.mulf %53, %51 : vector<8x128xf32>
    %55 = arith.subf %54, %46 : vector<8x128xf32>
    %cst_13 = arith.constant 2.000000e+00 : f32
    %56 = vector.broadcast %cst_13 : f32 to vector<8x128xf32>
    %57 = arith.mulf %56, %46 : vector<8x128xf32>
    %58 = arith.mulf %57, %55 : vector<8x128xf32>
    %59 = arith.subf %58, %51 : vector<8x128xf32>
    %60 = tpu.concatenate %45, %47, %46, %51, %55, %59 in 0 : vector<8x128xf32>, vector<8x128xf32>, vector<8x128xf32>, vector<8x128xf32>, vector<8x128xf32>, vector<8x128xf32> -> vector<48x128xf32>
    %cst_14 = arith.constant dense<0.000000e+00> : vector<2x128xf32>
    %61 = tpu.matmul %2, %60, %cst_14 {dimension_numbers = #tpu.dot_dimension_numbers<[1], [0], [0], [1], [0, 0, 1, 1], [], []>} : vector<2x48xf32>, vector<48x128xf32>, vector<2x128xf32> -> vector<2x128xf32>
    %c0_15 = arith.constant 0 : index
    %c0_16 = arith.constant 0 : index
    %62 = vector.load %arg4[%c0_15, %c0_16] : memref<2x128xf32, #tpu.memory_space<vmem>>, vector<2x128xf32>
    tpu.vector_store %arg4[%c0_15, %c0_16], %61 {strides = array<i32>} : memref<2x128xf32, #tpu.memory_space<vmem>>, vector<2x128xf32>,
    return
  }
  func.func @transform_0(%arg0: i32) -> (i32, i32) {
    %c0_i32 = arith.constant 0 : i32
    %c0_i32_0 = arith.constant 0 : i32
    return %c0_i32, %arg0 : i32, i32
  }
  func.func @transform_1(%arg0: i32) -> (i32, i32) {
    %c0_i32 = arith.constant 0 : i32
    %c0_i32_0 = arith.constant 0 : i32
    %c0_i32_1 = arith.constant 0 : i32
    return %c0_i32, %c0_i32_0 : i32, i32
  }
  func.func @transform_2(%arg0: i32) -> (i32, i32) {
    %c0_i32 = arith.constant 0 : i32
    %c0_i32_0 = arith.constant 0 : i32
    %c0_i32_1 = arith.constant 0 : i32
    return %c0_i32, %c0_i32_0 : i32, i32
  }
  func.func @transform_3(%arg0: i32) -> (i32, i32) {
    %c0_i32 = arith.constant 0 : i32
    %c0_i32_0 = arith.constant 0 : i32
    return %c0_i32, %arg0 : i32, i32
  }
}

</mosaic_0001>

<llo_original>
// kernel: tpu_custom_call.1
$region0: #{tpu_custom_call.1}
  #allocation0 [shape = 'u32[]', space=smem, size = 0x4, offset = 0x4, fixed_abs, tag = 'smem constant byte address 0x4 - core index']
  #allocation1 [shape = 'u32[144,128]{1,0:T(1,128)}', space=vmem, size = 0x12000, scoped, tag = 'internal scratch']
  %s0 = inlined_call_operand.hbm [shape: f32[8,128], index: 0, kind: input, shape index: {}]
  %s1 = inlined_call_operand.hbm [shape: f32[8,5], index: 1, kind: input, shape index: {}]
  %s2 = inlined_call_operand.vmem [shape: f32[2,48], index: 2, kind: input, shape index: {}]
  %s3 = inlined_call_operand.hbm [shape: f32[2,128], index: 3, kind: output, shape index: {}]
  %s4 = sld [smem:[#allocation0]]
  $region30: #{tpu_custom_call.1} parent=0
    _
  %s6 = ssub.s32 1, %s4
  %s7 = scalar_select 0, %s6, %s4
  $region1: #{tpu_custom_call.1} parent=0
    #allocation2 [shape = 'u8[4096]{0}', space=vmem, size = 0x1000, scoped, tag = 'input window, operand 0, single buffered']
    #allocation3 [shape = 's32[1]{0}', space=sflag, size = 0x4, scoped, tag = 'scoped memory for tpu_custom_call.1']
    #allocation4 [shape = 's32[1]{0}', space=sflag, size = 0x4, scoped, tag = 'scoped memory for tpu_custom_call.1']
    #allocation5 [shape = 'u8[4096]{0}', space=vmem, size = 0x1000, scoped, tag = 'input window, operand 1, single buffered']
    #allocation6 [shape = 's32[1]{0}', space=sflag, size = 0x4, scoped, tag = 'scoped memory for tpu_custom_call.1']
    #allocation7 [shape = 'u8[1024]{0}', space=vmem, size = 0x400, scoped, tag = 'output window, operand 0, single buffered']
    %8 = vsyncpa [#allocation3], 0
    %9 = vsyncpa [#allocation6], 0
    %10 = vsyncpa [#allocation4], 0
    // Predicated region
    $region2: #{tpu_custom_call.1} parent=1 // pred_check
      _
    $region3: #{tpu_custom_call.1} parent=1 // pred_check_branch
      %12 = sbr.rel (0) target = $region5
    $region4: #{tpu_custom_call.1} parent=1 // pred_region
      %s14 = ssub.s32 128, 128
      %15 = vsyncadd [#allocation3], %s14
      %s17 = sshll.u32 [#allocation2], 4
      %s18 = int_to_ptr.vmem [resolvable:$true] %s17
      %20 = dma.hbm_to_vmem [thread:$0]  %s0, 128, %s18, [#allocation3]
    $region5: #{tpu_custom_call.1} parent=1 // pred_fallthru
      _
    // Predicated region
    $region6: #{tpu_custom_call.1} parent=1 // pred_check
      _
    $region7: #{tpu_custom_call.1} parent=1 // pred_check_branch
      %22 = sbr.rel (0) target = $region9
    $region8: #{tpu_custom_call.1} parent=1 // pred_region
      %s24 = ssub.s32 128, 128
      %25 = vsyncadd [#allocation6], %s24
      %s27 = sshll.u32 [#allocation5], 4
      %s28 = int_to_ptr.vmem [resolvable:$true] %s27
      %30 = dma.hbm_to_vmem [thread:$0]  %s1, 128, %s28, [#allocation6]
    $region9: #{tpu_custom_call.1} parent=1 // pred_fallthru
      _
    // Predicated region
    $region10: #{tpu_custom_call.1} parent=1 // pred_check
      _
    $region11: #{tpu_custom_call.1} parent=1 // pred_check_branch
      %32 = sbr.rel (0) target = $region13
    $region12: #{tpu_custom_call.1} parent=1 // pred_region
      _
    $region13: #{tpu_custom_call.1} parent=1 // pred_fallthru
      _
    // Predicated region
    $region14: #{tpu_custom_call.1} parent=1 // pred_check
      _
    $region15: #{tpu_custom_call.1} parent=1 // pred_check_branch
      %34 = sbr.rel (0) target = $region17
    $region16: #{tpu_custom_call.1} parent=1 // pred_region
      %35 = dma.done [#allocation3], 128
    $region17: #{tpu_custom_call.1} parent=1 // pred_fallthru
      _
    // Predicated region
    $region18: #{tpu_custom_call.1} parent=1 // pred_check
      _
    $region19: #{tpu_custom_call.1} parent=1 // pred_check_branch
      %37 = sbr.rel (0) target = $region21
    $region20: #{tpu_custom_call.1} parent=1 // pred_region
      %38 = dma.done [#allocation6], 128
    $region21: #{tpu_custom_call.1} parent=1 // pred_fallthru
      _
    %v39 = vld [vmem:[#allocation2] sm:$0xff]
    %v40 = vld [vmem:[#allocation5] sm:$0xff]
    %v41 = vld [vmem:[%s2] sm:$0x3]
    %v42 = vtanh.pop %v39
    %44 = vset.pattern.permute.xlu0 0
    %45 = vperm.xlu0 %44, %v40
    %v46 = vpop.permute.xlu0 %45
    %v48 = vmul.f32 %v46, %v42
    %v49 = vmul.f32 %v42, 2.0
    %v50 = vmul.f32 %v49, %v42
    %v51 = vsub.f32 %v50, 1.0
    %52 = vset.pattern.permute.xlu0 1
    %53 = vperm.xlu0 %52, %v40
    %v54 = vpop.permute.xlu0 %53
    %v56 = vmul.f32 %v54, %v51
    %v57 = vadd.f32 %v48, %v56
    %v58 = vmul.f32 %v49, %v51
    %v59 = vsub.f32 %v58, %v42
    %60 = vset.pattern.permute.xlu0 2
    %61 = vperm.xlu0 %60, %v40
    %v62 = vpop.permute.xlu0 %61
    %v64 = vmul.f32 %v62, %v59
    %v65 = vadd.f32 %v57, %v64
    %v66 = vmul.f32 %v49, %v59
    %v67 = vsub.f32 %v66, %v51
    %68 = vset.pattern.permute.xlu0 3
    %69 = vperm.xlu0 %68, %v40
    %v70 = vpop.permute.xlu0 %69
    %v72 = vmul.f32 %v70, %v67
    %v73 = vadd.f32 %v65, %v72
    %v74 = vmul.f32 %v49, %v67
    %v75 = vsub.f32 %v74, %v59
    %76 = vset.pattern.permute.xlu0 4
    %77 = vperm.xlu0 %76, %v40
    %v78 = vpop.permute.xlu0 %77
    %v80 = vmul.f32 %v78, %v75
    %v81 = vadd.f32 %v73, %v80
    %v82 = vxor.u32 %v81, 2147483648
    %v83 = vmul.f32 %v82, 1.442695
    %v84 = vpow.pop %v83
    %v85 = vadd.f32 %v84, 1.0
    %v86 = vrcp.pop %v85
    %v87 = vmul.f32 1.0, %v86
    %v88 = vmul.f32 %v81, %v87
    %v89 = vtanh.pop %v81
    %v90 = vmul.f32 %v89, 2.0
    %v91 = vmul.f32 %v90, %v89
    %v92 = vsub.f32 %v91, 1.0
    %v93 = vmul.f32 %v90, %v92
    %v94 = vsub.f32 %v93, %v89
    %v95 = vmul.f32 %v90, %v94
    %v96 = vsub.f32 %v95, %v92
    %vm97 = vcmask 392192
    %v99 = vsel %vm97, %v41, 0
    %101 = vmatprep.subr.mxu0 0.0
    %102 = vmatpush1.msra.mxu0 %v88
    %103 = vmatprep.subr.mxu0 0.0
    %104 = vmatpush1.msra.mxu0 1.0
    %105 = vmatprep.subr.mxu0 0.0
    %106 = vmatpush1.msra.mxu0 %v89
    %107 = vmatprep.subr.mxu0 0.0
    %108 = vmatpush1.msra.mxu0 %v92
    %109 = vmatprep.subr.mxu0 0.0
    %110 = vmatpush1.msra.mxu0 %v94
    %111 = vmatprep.subr.mxu0 0.0
    %112 = vmatpush1.msra.mxu0 %v96
    %113 = vmatprep.subr.mxu0 0.0
    %114 = vmatpush1.msra.mxu0 0.0
    %115 = vmatprep.subr.mxu0 0.0
    %116 = vmatpush1.msra.mxu0 0.0
    %117 = vmatprep.subr.mxu0 0.0
    %118 = vmatpush1.msra.mxu0 0.0
    %119 = vmatprep.subr.mxu0 0.0
    %120 = vmatpush1.msra.mxu0 0.0
    %121 = vmatprep.subr.mxu0 0.0
    %122 = vmatpush1.msra.mxu0 0.0
    %123 = vmatprep.subr.mxu0 0.0
    %124 = vmatpush1.msra.mxu0 0.0
    %125 = vmatprep.subr.mxu0 0.0
    %126 = vmatpush1.msra.mxu0 0.0
    %127 = vmatprep.subr.mxu0 0.0
    %128 = vmatpush1.msra.mxu0 0.0
    %129 = vmatprep.subr.mxu0 0.0
    %130 = vmatpush1.msra.mxu0 0.0
    %131 = vmatprep.subr.mxu0 0.0
    %132 = vmatpush1.msra.mxu0 0.0
    %133 = vmatprep.subr.mxu0 0.0
    %134 = vmatpush1.msra.mxu0 0.0
    %135 = vmatprep.subr.mxu0 0.0
    %136 = vmatpush1.msra.mxu0 0.0
    %137 = vmatprep.subr.mxu0 0.0
    %138 = vmatpush1.msra.mxu0 0.0
    %139 = vmatprep.subr.mxu0 0.0
    %140 = vmatpush1.msra.mxu0 0.0
    %141 = vmatprep.subr.mxu0 0.0
    %142 = vmatpush1.msra.mxu0 0.0
    %143 = vmatprep.subr.mxu0 0.0
    %144 = vmatpush1.msra.mxu0 0.0
    %145 = vmatprep.subr.mxu0 0.0
    %146 = vmatpush1.msra.mxu0 0.0
    %147 = vmatprep.subr.mxu0 0.0
    %148 = vmatpush1.msra.mxu0 0.0
    %149 = vmatprep.subr.mxu0 0.0
    %150 = vmatpush1.msra.mxu0 0.0
    %151 = vmatprep.subr.mxu0 0.0
    %152 = vmatpush1.msra.mxu0 0.0
    %153 = vmatprep.subr.mxu0 0.0
    %154 = vmatpush1.msra.mxu0 0.0
    %155 = vmatprep.subr.mxu0 0.0
    %156 = vmatpush1.msra.mxu0 0.0
    %157 = vmatprep.subr.mxu0 0.0
    %158 = vmatpush1.msra.mxu0 0.0
    %159 = vmatprep.subr.mxu0 0.0
    %160 = vmatpush1.msra.mxu0 0.0
    %161 = vmatprep.subr.mxu0 0.0
    %162 = vmatpush1.msra.mxu0 0.0
    %163 = vmatprep.subr.mxu0 0.0
    %164 = vmatpush1.msra.mxu0 0.0
    %165 = vmatprep.mubr.f32.mxu0 0.0
    %166 = vmatmul.mubr.f32.gmra.mrb[0].mxu0 %v99
    %v167 = vpop.f32.mrb[0].mxu0
    %v168 = vadd.f32 0.0, %v167
    %v169 = vpop.f32.mrb[0].mxu0
    %170 = vdwg.mxu0
    %171 = vst [vmem:[#allocation7] sm:$0x3] %v168
    // Predicated region
    $region22: #{tpu_custom_call.1} parent=1 // pred_check
      _
    $region23: #{tpu_custom_call.1} parent=1 // pred_check_branch
      %173 = sbr.rel (0) target = $region25
    $region24: #{tpu_custom_call.1} parent=1 // pred_region
      %s175 = ssub.s32 32, 32
      %176 = vsyncadd [#allocation4], %s175
      %s178 = sshll.u32 [#allocation7], 4
      %s179 = int_to_ptr.vmem [resolvable:$true] %s178
      %181 = dma.vmem_to_hbm [thread:$0]  %s179, 32, %s3, [#allocation4]
    $region25: #{tpu_custom_call.1} parent=1 // pred_fallthru
      _
    // Predicated region
    $region26: #{tpu_custom_call.1} parent=1 // pred_check
      _
    $region27: #{tpu_custom_call.1} parent=1 // pred_check_branch
      %183 = sbr.rel (0) target = $region29
    $region28: #{tpu_custom_call.1} parent=1 // pred_region
      %184 = dma.done [#allocation4], 32
    $region29: #{tpu_custom_call.1} parent=1 // pred_fallthru
      _
    %185 = vsyncpa [#allocation3], 1
    %186 = vsyncpa [#allocation6], 1
    %187 = vsyncpa [#allocation4], 1

</llo_original>
